<compile_context>
chip_gen: v7x
topology: tpu7x:2x2x1
jax: 0.10.0
libtpu: 0.0.40
codegen_flags: <defaults>
</compile_context>

<pallas_src>
import math
import numpy as np
import jax
import jax.numpy as jnp
from jax.experimental import pallas as pl
from jax.experimental.pallas import tpu as pltpu

_LANE = 128
_SUBLANE = 8


def _round_up(x, m):
    return ((x + m - 1) // m) * m


def _pad_feature_dim(d, lane_threshold=64):
    """Pad a hidden feature dim: to 128 lanes if it's already wide (so W panel
    reads are full lane tiles), else to the 8-sublane granularity."""
    if d >= lane_threshold:
        return _round_up(d, _LANE)
    return _round_up(d, _SUBLANE)


# ---------------------------------------------------------------------------
# Parameters
# ---------------------------------------------------------------------------

def init_simple_nn_params(key, hidden_layers):
    """xavier_uniform weights (PyTorch layout [out, in]) + zero biases."""
    dims = [1] + list(hidden_layers) + [1]
    params = []
    for i in range(len(dims) - 1):
        fan_in, fan_out = dims[i], dims[i + 1]
        key, sub = jax.random.split(key)
        bound = math.sqrt(6.0 / (fan_in + fan_out))
        w = jax.random.uniform(sub, (fan_out, fan_in), dtype=jnp.float32,
                               minval=-bound, maxval=bound)
        b = jnp.zeros((fan_out,), dtype=jnp.float32)
        params.append((w, b))
    return params


def pack_params(params):
    """Pack the whole MLP into one [R, C] f32 slab (zero padded).

    Slab layout (row offsets multiples of 8, C a multiple of 128):
      first layer : rows = out features; col 0 = w column, col 1 = bias column
      hidden i    : rows = out features; cols [0:in_pad] = W, bias in its own
                    lane tile at col round_up(in_pad, 128)
      last layer  : rows = in  features; col 0 = W^T column, (row 0, col 1) = bias
    Zero padding is exact: padded rows/cols contribute 0 through ReLU / sums.
    """
    n = len(params)
    assert n >= 2, "need at least one hidden layer"
    dims = [params[0][0].shape[1]] + [w.shape[0] for w, _ in params]
    pdims = [_pad_feature_dim(d) for d in dims]

    slab_rows = [pdims[i + 1] for i in range(n - 1)] + [pdims[n - 1]]
    offsets, off = [], 0
    for r in slab_rows:
        offsets.append(off)
        off += r
    R = _round_up(off, _SUBLANE)

    cols_needed = [2]
    for i in range(1, n - 1):
        cols_needed.append(_round_up(pdims[i], _LANE) + 1)
    C = _round_up(max(cols_needed), _LANE)

    buf = np.zeros((R, C), dtype=np.float32)
    meta = []
    for i, (w, b) in enumerate(params):
        w = np.asarray(w, dtype=np.float32)
        b = np.asarray(b, dtype=np.float32)
        out_f, in_f = w.shape
        o = offsets[i]
        if i == 0:
            buf[o:o + out_f, 0] = w[:, 0]
            buf[o:o + out_f, 1] = b
            meta.append(("first", o, pdims[1]))
        elif i < n - 1:
            bias_col = _round_up(pdims[i], _LANE)
            buf[o:o + out_f, 0:in_f] = w
            buf[o:o + out_f, bias_col] = b
            meta.append(("hidden", o, pdims[i + 1], pdims[i], bias_col))
        else:
            buf[o:o + in_f, 0] = w[0, :]
            buf[o, 1] = b[0]
            meta.append(("last", o, pdims[i]))
    return jnp.asarray(buf), tuple(meta)


# ---------------------------------------------------------------------------
# Kernel
# ---------------------------------------------------------------------------

def make_mlp_kernel(meta, mxu_dtype=None):
    """Kernel over one batch tile: x_ref [1, TB], p_ref [R, C], o_ref [1, TB].

    mxu_dtype: if set (e.g. jnp.bfloat16), MXU operands of the hidden x hidden
    contractions are cast to it (f32 accumulation).  Worth it for hidden widths
    of a few hundred+; the demo keeps f32 (exact, passes 1e-5 at H=32).
    """

    def kernel(x_ref, p_ref, o_ref):
        x = x_ref[...]                                        # [1, TB] lane-dense

        # First layer: K=1 matmul -> VPU broadcast multiply (no MXU).
        _, o0, h0 = meta[0]
        w0 = p_ref[o0:o0 + h0, 0:1]                           # [H0, 1]
        b0 = p_ref[o0:o0 + h0, 1:2]                           # [H0, 1]
        h = jnp.maximum(w0 * x + b0, 0.0)                     # [H0, TB]

        # Hidden x hidden layers: real contractions -> MXU (f32 acc).
        for _, oi, out_p, in_p, bias_col in meta[1:-1]:
            w = p_ref[oi:oi + out_p, 0:in_p]                  # [out, in]
            b = p_ref[oi:oi + out_p, bias_col:bias_col + 1]   # [out, 1]
            if mxu_dtype is not None:
                acc = jnp.dot(w.astype(mxu_dtype), h.astype(mxu_dtype),
                              preferred_element_type=jnp.float32)
            else:
                acc = jnp.dot(w, h, preferred_element_type=jnp.float32)
            h = jnp.maximum(acc + b, 0.0)

        # Last layer: N=1 matmul -> VPU multiply + sublane reduce, then tanh.
        _, oL, inL = meta[-1]
        wl = p_ref[oL:oL + inL, 0:1]                          # [inL, 1]
        bl = p_ref[oL:oL + 1, 1:2]                            # [1, 1]
        y = jnp.sum(wl * h, axis=0, keepdims=True) + bl       # [1, TB]
        o_ref[...] = jnp.tanh(y)

    return kernel


def _dimension_semantics(n_tiles):
    """Use CORE_PARALLEL on v7x (2 TCs/chip) when there are >=2 tiles; plain
    "parallel" elsewhere (near-no-op on single-TC v5e/v6e)."""
    try:
        kind = jax.devices()[0].device_kind.lower()
    except Exception:
        kind = ""
    if "v7" in kind and n_tiles >= 2 and hasattr(pltpu, "CORE_PARALLEL"):
        return (pltpu.CORE_PARALLEL,)
    return ("parallel",)


def simple_nn_forward(x, packed, meta, *, batch_tile=8192, mxu_dtype=None):
    """x: [B, 1] f32 -> [B, 1] f32 (internally a lane-dense [1, B_pad] slab)."""
    B = int(x.shape[0])
    B_ceil = _round_up(max(B, 1), _LANE)
    TB = _round_up(min(int(batch_tile), B_ceil), _LANE)
    B_pad = _round_up(B_ceil, TB)
    n_tiles = B_pad // TB

    x_row = jnp.pad(x.reshape(-1).astype(jnp.float32), (0, B_pad - B))
    x_row = x_row.reshape(1, B_pad)

    kernel = make_mlp_kernel(meta, mxu_dtype=mxu_dtype)
    out = pl.pallas_call(
        kernel,
        out_shape=jax.ShapeDtypeStruct((1, B_pad), jnp.float32),
        grid_spec=pltpu.PrefetchScalarGridSpec(
            num_scalar_prefetch=0,
            grid=(n_tiles,),
            in_specs=[
                # x batch tile; if DMA is ever exposed at huge TB, deepen with
                # pipeline_mode=pl.Buffered(3) rather than shrinking TB.
                pl.BlockSpec((1, TB), lambda i: (0, i)),
                # Param slab, constant index -> VMEM-resident across steps.
                # TODO(synk): for hidden widths >=1024 on v7x (64 MiB VMEM),
                # single-buffer this slab (pipeline_mode=pl.Buffered(1)) to
                # halve its footprint.
                pl.BlockSpec(packed.shape, lambda i: (0, 0)),
            ],
            out_specs=pl.BlockSpec((1, TB), lambda i: (0, i)),
        ),
        compiler_params=pltpu.CompilerParams(
            dimension_semantics=_dimension_semantics(n_tiles),
            # Raise v5e's 16 MiB scoped default; 32 MiB is safe on all gens.
            vmem_limit_bytes=32 * 1024 * 1024),
    )(x_row, packed)
    return out[0, :B].reshape(B, 1)


def simple_nn_ref(x, params):
    """Pure-JAX reference (PyTorch semantics)."""
    h = x
    n = len(params)
    for i, (w, b) in enumerate(params):
        h = h @ w.T + b
        if i < n - 1:
            h = jnp.maximum(h, 0.0)
        else:
            h = jnp.tanh(h)
    return h


if __name__ == "__main__":
    key = jax.random.PRNGKey(0)
    key_x, key_p = jax.random.split(key)

    hidden_layers = [32, 32]
    batch = 8   # tiny demo batch; kernel pads to one 128-lane tile

    params = init_simple_nn_params(key_p, hidden_layers)
    packed, meta = pack_params(params)
    x = jax.random.normal(key_x, (batch, 1), dtype=jnp.float32)

    out = jax.block_until_ready(simple_nn_forward(x, packed, meta))
    ref = simple_nn_ref(x, params)
    assert out.shape == (batch, 1)
    assert jnp.allclose(out, ref, atol=1e-5, rtol=1e-5), "mismatch vs reference"

    # Second check: multi-tile grid path (grid > 1, padded tail lanes sliced off).
    x2 = jax.random.normal(key_x, (300, 1), dtype=jnp.float32)
    out2 = jax.block_until_ready(simple_nn_forward(x2, packed, meta, batch_tile=128))
    ref2 = simple_nn_ref(x2, params)
    assert out2.shape == (300, 1)
    assert jnp.allclose(out2, ref2, atol=1e-5, rtol=1e-5), "mismatch vs reference (tiled)"

    print("KERNEL_OK")
</pallas_src>

<mosaic_0001>
module attributes {stable_mosaic.version = 11 : i64} {
  func.func @kernel(%arg0: i32, %arg1: memref<1x128xf32, #tpu.memory_space<vmem>>, %arg2: memref<96x256xf32, #tpu.memory_space<vmem>>, %arg3: memref<1x128xf32, #tpu.memory_space<vmem>>) attributes {dimension_semantics = [#tpu.dimension_semantics<parallel>], iteration_bounds = array<i64: 1>, scalar_prefetch = 0 : i64, scratch_operands = 0 : i64, tpu.core_type = #tpu.core_type<tc>, window_params = [{transform_indices = @transform_0, window_bounds = array<i64: 1, 128>}, {pipeline_mode = #tpu.pipeline_mode<synchronous>, transform_indices = @transform_1, window_bounds = array<i64: 96, 256>}, {transform_indices = @transform_2, window_bounds = array<i64: 1, 128>}]} {
    %c0 = arith.constant 0 : index
    %c0_0 = arith.constant 0 : index
    %0 = vector.load %arg1[%c0, %c0_0] : memref<1x128xf32, #tpu.memory_space<vmem>>, vector<1x128xf32>
    %c0_1 = arith.constant 0 : index
    %c0_2 = arith.constant 0 : index
    %1 = vector.load %arg2[%c0_1, %c0_2] : memref<96x256xf32, #tpu.memory_space<vmem>>, vector<32x1xf32>
    %c0_3 = arith.constant 0 : index
    %c1 = arith.constant 1 : index
    %2 = vector.load %arg2[%c0_3, %c1] : memref<96x256xf32, #tpu.memory_space<vmem>>, vector<32x1xf32>
    %3 = vector.broadcast %1 : vector<32x1xf32> to vector<32x128xf32>
    %4 = vector.broadcast %0 : vector<1x128xf32> to vector<32x128xf32>
    %5 = arith.mulf %3, %4 : vector<32x128xf32>
    %6 = vector.broadcast %2 : vector<32x1xf32> to vector<32x128xf32>
    %7 = arith.addf %5, %6 : vector<32x128xf32>
    %cst = arith.constant 0.000000e+00 : f32
    %8 = vector.broadcast %cst : f32 to vector<32x128xf32>
    %9 = arith.maximumf %7, %8 : vector<32x128xf32>
    %c32 = arith.constant 32 : index
    %c0_4 = arith.constant 0 : index
    %10 = vector.load %arg2[%c32, %c0_4] : memref<96x256xf32, #tpu.memory_space<vmem>>, vector<32x32xf32>
    %c32_5 = arith.constant 32 : index
    %c128 = arith.constant 128 : index
    %11 = vector.load %arg2[%c32_5, %c128] : memref<96x256xf32, #tpu.memory_space<vmem>>, vector<32x1xf32>
    %cst_6 = arith.constant dense<0.000000e+00> : vector<32x128xf32>
    %12 = tpu.matmul %10, %9, %cst_6 {dimension_numbers = #tpu.dot_dimension_numbers<[1], [0], [0], [1], [0, 0, 1, 1], [], []>} : vector<32x32xf32>, vector<32x128xf32>, vector<32x128xf32> -> vector<32x128xf32>
    %13 = vector.broadcast %11 : vector<32x1xf32> to vector<32x128xf32>
    %14 = arith.addf %12, %13 : vector<32x128xf32>
    %cst_7 = arith.constant 0.000000e+00 : f32
    %15 = vector.broadcast %cst_7 : f32 to vector<32x128xf32>
    %16 = arith.maximumf %14, %15 : vector<32x128xf32>
    %c64 = arith.constant 64 : index
    %c0_8 = arith.constant 0 : index
    %17 = vector.load %arg2[%c64, %c0_8] : memref<96x256xf32, #tpu.memory_space<vmem>>, vector<32x1xf32>
    %c64_9 = arith.constant 64 : index
    %c1_10 = arith.constant 1 : index
    %18 = vector.load %arg2[%c64_9, %c1_10] : memref<96x256xf32, #tpu.memory_space<vmem>>, vector<1x1xf32>
    %19 = vector.broadcast %17 : vector<32x1xf32> to vector<32x128xf32>
    %20 = arith.mulf %19, %16 : vector<32x128xf32>
    %cst_11 = arith.constant dense<0.000000e+00> : vector<128xf32>
    %21 = vector.multi_reduction <add>, %20, %cst_11 [0] : vector<32x128xf32> to vector<128xf32>
    %22 = vector.shape_cast %21 : vector<128xf32> to vector<1x128xf32>
    %23 = vector.broadcast %18 : vector<1x1xf32> to vector<1x128xf32>
    %24 = arith.addf %22, %23 : vector<1x128xf32>
    %25 = math.tanh %24 : vector<1x128xf32>
    %c0_12 = arith.constant 0 : index
    %c0_13 = arith.constant 0 : index
    %26 = vector.load %arg3[%c0_12, %c0_13] : memref<1x128xf32, #tpu.memory_space<vmem>>, vector<1x128xf32>
    tpu.vector_store %arg3[%c0_12, %c0_13], %25 {strides = array<i32>} : memref<1x128xf32, #tpu.memory_space<vmem>>, vector<1x128xf32>,
    return
  }
  func.func @transform_0(%arg0: i32) -> (i32, i32) {
    %c0_i32 = arith.constant 0 : i32
    %c0_i32_0 = arith.constant 0 : i32
    return %c0_i32, %arg0 : i32, i32
  }
  func.func @transform_1(%arg0: i32) -> (i32, i32) {
    %c0_i32 = arith.constant 0 : i32
    %c0_i32_0 = arith.constant 0 : i32
    %c0_i32_1 = arith.constant 0 : i32
    return %c0_i32, %c0_i32_0 : i32, i32
  }
  func.func @transform_2(%arg0: i32) -> (i32, i32) {
    %c0_i32 = arith.constant 0 : i32
    %c0_i32_0 = arith.constant 0 : i32
    return %c0_i32, %arg0 : i32, i32
  }
}

</mosaic_0001>

<llo_original>
// kernel: tpu_custom_call.1
$region0: #{tpu_custom_call.1}
  #allocation0 [shape = 'u32[]', space=smem, size = 0x4, offset = 0x4, fixed_abs, tag = 'smem constant byte address 0x4 - core index']
  #allocation1 [shape = 'u32[144,128]{1,0:T(1,128)}', space=vmem, size = 0x12000, scoped, tag = 'internal scratch']
  %s0 = inlined_call_operand.hbm [shape: f32[1,128], index: 0, kind: input, shape index: {}]
  %s1 = inlined_call_operand.hbm [shape: f32[96,256], index: 1, kind: input, shape index: {}]
  %s2 = inlined_call_operand.hbm [shape: f32[1,128], index: 2, kind: output, shape index: {}]
  %s3 = sld [smem:[#allocation0]]
  $region26: #{tpu_custom_call.1} parent=0
    _
  %s5 = ssub.s32 1, %s3
  %s6 = scalar_select 0, %s5, %s3
  $region1: #{tpu_custom_call.1} parent=0
    #allocation2 [shape = 'u8[512]{0}', space=vmem, size = 0x400, scoped, tag = 'input window, operand 0, single buffered']
    #allocation3 [shape = 's32[1]{0}', space=sflag, size = 0x4, scoped, tag = 'scoped memory for tpu_custom_call.1']
    #allocation4 [shape = 's32[1]{0}', space=sflag, size = 0x4, scoped, tag = 'scoped memory for tpu_custom_call.1']
    #allocation5 [shape = 'u8[98304]{0}', space=vmem, size = 0x18000, scoped, tag = 'input window, operand 1, single buffered']
    #allocation6 [shape = 's32[1]{0}', space=sflag, size = 0x4, scoped, tag = 'scoped memory for tpu_custom_call.1']
    #allocation7 [shape = 'u8[512]{0}', space=vmem, size = 0x400, scoped, tag = 'output window, operand 0, single buffered']
    %7 = vsyncpa [#allocation3], 0
    %8 = vsyncpa [#allocation6], 0
    %9 = vsyncpa [#allocation4], 0
    // Predicated region
    $region2: #{tpu_custom_call.1} parent=1 // pred_check
      _
    $region3: #{tpu_custom_call.1} parent=1 // pred_check_branch
      %11 = sbr.rel (0) target = $region5
    $region4: #{tpu_custom_call.1} parent=1 // pred_region
      %s13 = ssub.s32 16, 16
      %14 = vsyncadd [#allocation3], %s13
      %s16 = sshll.u32 [#allocation2], 4
      %s17 = int_to_ptr.vmem [resolvable:$true] %s16
      %19 = dma.hbm_to_vmem [thread:$0]  %s0, 16, %s17, [#allocation3]
    $region5: #{tpu_custom_call.1} parent=1 // pred_fallthru
      _
    // Predicated region
    $region6: #{tpu_custom_call.1} parent=1 // pred_check
      _
    $region7: #{tpu_custom_call.1} parent=1 // pred_check_branch
      %21 = sbr.rel (0) target = $region9
    $region8: #{tpu_custom_call.1} parent=1 // pred_region
      %s23 = ssub.s32 3072, 3072
      %24 = vsyncadd [#allocation6], %s23
      %s25 = sshll.u32 [#allocation5], 4
      %s26 = int_to_ptr.vmem [resolvable:$true] %s25
      %31 = dma.hbm_to_vmem [thread:$0]  %s1, 3072, %s26, [#allocation6], 256, 256, 16
    $region9: #{tpu_custom_call.1} parent=1 // pred_fallthru
      _
    // Predicated region
    $region10: #{tpu_custom_call.1} parent=1 // pred_check
      _
    $region11: #{tpu_custom_call.1} parent=1 // pred_check_branch
      %33 = sbr.rel (0) target = $region13
    $region12: #{tpu_custom_call.1} parent=1 // pred_region
      %34 = dma.done [#allocation3], 16
    $region13: #{tpu_custom_call.1} parent=1 // pred_fallthru
      _
    // Predicated region
    $region14: #{tpu_custom_call.1} parent=1 // pred_check
      _
    $region15: #{tpu_custom_call.1} parent=1 // pred_check_branch
      %36 = sbr.rel (0) target = $region17
    $region16: #{tpu_custom_call.1} parent=1 // pred_region
      %37 = dma.done [#allocation6], 3072
    $region17: #{tpu_custom_call.1} parent=1 // pred_fallthru
      _
    %v38 = vld [vmem:[#allocation2] sm:$0x1]
    %v39 = vld [vmem:[#allocation5] sm:$0xff]
    %v40 = vld [vmem:[#allocation5 + $0x10] sm:$0xff]
    %v41 = vld [vmem:[#allocation5 + $0x20] sm:$0xff]
    %v42 = vld [vmem:[#allocation5 + $0x30] sm:$0xff]
    %44 = vset.pattern.permute.xlu0 0
    %45 = vperm.xlu0 %44, %v39
    %v46 = vpop.permute.xlu0 %45
    %49 = vset.pattern.permute.xlu0 0
    %50 = vperm.xlu0 %49, %v40
    %v51 = vpop.permute.xlu0 %50
    %54 = vset.pattern.permute.xlu0 0
    %55 = vperm.xlu0 %54, %v41
    %v56 = vpop.permute.xlu0 %55
    %59 = vset.pattern.permute.xlu0 0
    %60 = vperm.xlu0 %59, %v42
    %v61 = vpop.permute.xlu0 %60
    %v64 = vlaneseq
    %v65 = vshrl.u32 %v64, 7
    %v66 = vsub.s32 0, %v65
    %v67 = vrot.slane %v38, %v66
    %v69 = vmul.f32 %v46, %v67
    %v70 = vmul.f32 %v51, %v67
    %v71 = vmul.f32 %v56, %v67
    %v72 = vmul.f32 %v61, %v67
    %73 = vset.pattern.permute.xlu0 1
    %74 = vperm.xlu0 %73, %v39
    %v75 = vpop.permute.xlu0 %74
    %77 = vset.pattern.permute.xlu0 1
    %78 = vperm.xlu0 %77, %v40
    %v79 = vpop.permute.xlu0 %78
    %81 = vset.pattern.permute.xlu0 1
    %82 = vperm.xlu0 %81, %v41
    %v83 = vpop.permute.xlu0 %82
    %85 = vset.pattern.permute.xlu0 1
    %86 = vperm.xlu0 %85, %v42
    %v87 = vpop.permute.xlu0 %86
    %v89 = vadd.f32 %v69, %v75
    %v90 = vadd.f32 %v70, %v79
    %v91 = vadd.f32 %v71, %v83
    %v92 = vadd.f32 %v72, %v87
    %v93 = vmax.f32 %v89, 0.0
    %v94 = vmax.f32 %v90, 0.0
    %v95 = vmax.f32 %v91, 0.0
    %v96 = vmax.f32 %v92, 0.0
    %v97 = vld [vmem:[#allocation5 + $0x40] sm:$0xff]
    %v98 = vld [vmem:[#allocation5 + $0x50] sm:$0xff]
    %v99 = vld [vmem:[#allocation5 + $0x60] sm:$0xff]
    %v100 = vld [vmem:[#allocation5 + $0x70] sm:$0xff]
    %v101 = vld [vmem:[#allocation5 + $0x48] sm:$0xff]
    %v102 = vld [vmem:[#allocation5 + $0x58] sm:$0xff]
    %v103 = vld [vmem:[#allocation5 + $0x68] sm:$0xff]
    %v104 = vld [vmem:[#allocation5 + $0x78] sm:$0xff]
    %106 = vset.pattern.permute.xlu0 0
    %107 = vperm.xlu0 %106, %v101
    %v108 = vpop.permute.xlu0 %107
    %111 = vset.pattern.permute.xlu0 0
    %112 = vperm.xlu0 %111, %v102
    %v113 = vpop.permute.xlu0 %112
    %116 = vset.pattern.permute.xlu0 0
    %117 = vperm.xlu0 %116, %v103
    %v118 = vpop.permute.xlu0 %117
    %121 = vset.pattern.permute.xlu0 0
    %122 = vperm.xlu0 %121, %v104
    %v123 = vpop.permute.xlu0 %122
    %vm125 = vcmask 261120
    %v127 = vsel %vm125, %v97, 0
    %v130 = vsel %vm125, %v98, 0
    %v133 = vsel %vm125, %v99, 0
    %v136 = vsel %vm125, %v100, 0
    %138 = vmatprep.subr.mxu0 0.0
    %139 = vmatpush1.msra.mxu0 %v93
    %140 = vmatprep.subr.mxu0 0.0
    %141 = vmatpush1.msra.mxu0 %v94
    %142 = vmatprep.subr.mxu0 0.0
    %143 = vmatpush1.msra.mxu0 %v95
    %144 = vmatprep.subr.mxu0 0.0
    %145 = vmatpush1.msra.mxu0 %v96
    %146 = vmatprep.subr.mxu0 0.0
    %147 = vmatpush1.msra.mxu0 0.0
    %148 = vmatprep.subr.mxu0 0.0
    %149 = vmatpush1.msra.mxu0 0.0
    %150 = vmatprep.subr.mxu0 0.0
    %151 = vmatpush1.msra.mxu0 0.0
    %152 = vmatprep.subr.mxu0 0.0
    %153 = vmatpush1.msra.mxu0 0.0
    %154 = vmatprep.subr.mxu0 0.0
    %155 = vmatpush1.msra.mxu0 0.0
    %156 = vmatprep.subr.mxu0 0.0
    %157 = vmatpush1.msra.mxu0 0.0
    %158 = vmatprep.subr.mxu0 0.0
    %159 = vmatpush1.msra.mxu0 0.0
    %160 = vmatprep.subr.mxu0 0.0
    %161 = vmatpush1.msra.mxu0 0.0
    %162 = vmatprep.subr.mxu0 0.0
    %163 = vmatpush1.msra.mxu0 0.0
    %164 = vmatprep.subr.mxu0 0.0
    %165 = vmatpush1.msra.mxu0 0.0
    %166 = vmatprep.subr.mxu0 0.0
    %167 = vmatpush1.msra.mxu0 0.0
    %168 = vmatprep.subr.mxu0 0.0
    %169 = vmatpush1.msra.mxu0 0.0
    %170 = vmatprep.subr.mxu0 0.0
    %171 = vmatpush1.msra.mxu0 0.0
    %172 = vmatprep.subr.mxu0 0.0
    %173 = vmatpush1.msra.mxu0 0.0
    %174 = vmatprep.subr.mxu0 0.0
    %175 = vmatpush1.msra.mxu0 0.0
    %176 = vmatprep.subr.mxu0 0.0
    %177 = vmatpush1.msra.mxu0 0.0
    %178 = vmatprep.subr.mxu0 0.0
    %179 = vmatpush1.msra.mxu0 0.0
    %180 = vmatprep.subr.mxu0 0.0
    %181 = vmatpush1.msra.mxu0 0.0
    %182 = vmatprep.subr.mxu0 0.0
    %183 = vmatpush1.msra.mxu0 0.0
    %184 = vmatprep.subr.mxu0 0.0
    %185 = vmatpush1.msra.mxu0 0.0
    %186 = vmatprep.subr.mxu0 0.0
    %187 = vmatpush1.msra.mxu0 0.0
    %188 = vmatprep.subr.mxu0 0.0
    %189 = vmatpush1.msra.mxu0 0.0
    %190 = vmatprep.subr.mxu0 0.0
    %191 = vmatpush1.msra.mxu0 0.0
    %192 = vmatprep.subr.mxu0 0.0
    %193 = vmatpush1.msra.mxu0 0.0
    %194 = vmatprep.subr.mxu0 0.0
    %195 = vmatpush1.msra.mxu0 0.0
    %196 = vmatprep.subr.mxu0 0.0
    %197 = vmatpush1.msra.mxu0 0.0
    %198 = vmatprep.subr.mxu0 0.0
    %199 = vmatpush1.msra.mxu0 0.0
    %200 = vmatprep.subr.mxu0 0.0
    %201 = vmatpush1.msra.mxu0 0.0
    %202 = vmatprep.mubr.f32.mxu0 0.0
    %203 = vmatmul.mubr.f32.gmra.mrb[0].mxu0 %v127
    %v204 = vpop.f32.mrb[0].mxu0
    %v205 = vadd.f32 %v108, %v204
    %v206 = vpop.f32.mrb[0].mxu0
    %207 = vmatprep.mubr.f32.mxu0 0.0
    %208 = vmatmul.mubr.f32.gmra.mrb[0].mxu0 %v130
    %v209 = vpop.f32.mrb[0].mxu0
    %v210 = vadd.f32 %v113, %v209
    %v211 = vpop.f32.mrb[0].mxu0
    %212 = vmatprep.mubr.f32.mxu0 0.0
    %213 = vmatmul.mubr.f32.gmra.mrb[0].mxu0 %v133
    %v214 = vpop.f32.mrb[0].mxu0
    %v215 = vadd.f32 %v118, %v214
    %v216 = vpop.f32.mrb[0].mxu0
    %217 = vmatprep.mubr.f32.mxu0 0.0
    %218 = vmatmul.mubr.f32.gmra.mrb[0].mxu0 %v136
    %v219 = vpop.f32.mrb[0].mxu0
    %v220 = vadd.f32 %v123, %v219
    %v221 = vpop.f32.mrb[0].mxu0
    %222 = vdwg.mxu0
    %v223 = vmax.f32 %v205, 0.0
    %v224 = vmax.f32 %v210, 0.0
    %v225 = vmax.f32 %v215, 0.0
    %v226 = vmax.f32 %v220, 0.0
    %v227 = vld [vmem:[#allocation5 + $0x80] sm:$0xff]
    %v228 = vld [vmem:[#allocation5 + $0x90] sm:$0xff]
    %v229 = vld [vmem:[#allocation5 + $0xa0] sm:$0xff]
    %v230 = vld [vmem:[#allocation5 + $0xb0] sm:$0xff]
    %v231 = vld [vmem:[#allocation5 + $0x80] ss:$0 sm:$0xff]
    %233 = vset.pattern.permute.xlu0 0
    %234 = vperm.xlu0 %233, %v227
    %v235 = vpop.permute.xlu0 %234
    %238 = vset.pattern.permute.xlu0 0
    %239 = vperm.xlu0 %238, %v228
    %v240 = vpop.permute.xlu0 %239
    %243 = vset.pattern.permute.xlu0 0
    %244 = vperm.xlu0 %243, %v229
    %v245 = vpop.permute.xlu0 %244
    %248 = vset.pattern.permute.xlu0 0
    %249 = vperm.xlu0 %248, %v230
    %v250 = vpop.permute.xlu0 %249
    %v252 = vmul.f32 %v235, %v223
    %v253 = vmul.f32 %v240, %v224
    %v254 = vmul.f32 %v245, %v225
    %v255 = vmul.f32 %v250, %v226
    %v256 = vadd.f32 %v252, %v253
    %v257 = vadd.f32 %v256, %v254
    %v258 = vadd.f32 %v257, %v255
    %v259 = vrot.slane %v258, 4
    %v260 = vadd.f32 %v258, %v259
    %v261 = vrot.slane %v260, 2
    %v262 = vadd.f32 %v260, %v261
    %v263 = vrot.slane %v262, 1
    %v264 = vadd.f32 %v262, %v263
    %266 = vset.pattern.permute.xlu0 1
    %267 = vperm.xlu0 %266, %v231
    %v268 = vpop.permute.xlu0 %267
    %v270 = vadd.f32 %v264, %v268
    %v271 = vtanh.pop %v270
    %272 = vst [vmem:[#allocation7] sm:$0x1] %v271
    // Predicated region
    $region18: #{tpu_custom_call.1} parent=1 // pred_check
      _
    $region19: #{tpu_custom_call.1} parent=1 // pred_check_branch
      %274 = sbr.rel (0) target = $region21
    $region20: #{tpu_custom_call.1} parent=1 // pred_region
      %s276 = ssub.s32 16, 16
      %277 = vsyncadd [#allocation4], %s276
      %s279 = sshll.u32 [#allocation7], 4
      %s280 = int_to_ptr.vmem [resolvable:$true] %s279
      %282 = dma.vmem_to_hbm [thread:$0]  %s280, 16, %s2, [#allocation4]
    $region21: #{tpu_custom_call.1} parent=1 // pred_fallthru
      _
    // Predicated region
    $region22: #{tpu_custom_call.1} parent=1 // pred_check
      _
    $region23: #{tpu_custom_call.1} parent=1 // pred_check_branch
      %284 = sbr.rel (0) target = $region25
    $region24: #{tpu_custom_call.1} parent=1 // pred_region
      %285 = dma.done [#allocation4], 16
    $region25: #{tpu_custom_call.1} parent=1 // pred_fallthru
      _
    %286 = vsyncpa [#allocation3], 1
    %287 = vsyncpa [#allocation6], 1
    %288 = vsyncpa [#allocation4], 1

</llo_original>
